<compile_context>
chip_gen: v6e
topology: v6e:2x2x1
jax: 0.10.0
libtpu: 0.0.40
codegen_flags: <defaults>
</compile_context>

<pallas_src>
import functools

import jax
import jax.numpy as jnp
from jax.experimental import pallas as pl
from jax.experimental.pallas import tpu as pltpu


def _round_up(x, m):
    return ((x + m - 1) // m) * m


def _pick_tile_h(H, W, max_rows=1024):
    """Largest TILE_H dividing H with TILE_H*W a multiple of 8 and <= max_rows."""
    cands = [th for th in range(1, H + 1)
             if H % th == 0 and (th * W) % 8 == 0 and th * W <= max_rows]
    return max(cands) if cands else H   # fall back to the whole image


def _conv_block_kernel(x_ref, w_ref, b_ref, o_ref, *, tile_h, W, negative_slope):
    # x_ref: (1, H+2, W+2, Cin_p)   bf16 padded image, resident across tile axis
    # w_ref: (K_p, Cout_p)          bf16 im2col weights (K zero-padded to 128-mult)
    # b_ref: (1, Cout_p)            f32 bias (zero-padded)
    # o_ref: (1, tile_h*W, Cout_p)  bf16 output row-tile, lane-dense (Cout_p%128==0)
    cin_p = x_ref.shape[3]
    k_real = 9 * cin_p
    k_p = w_ref.shape[0]

    t = pl.program_id(1)
    row0 = pl.multiple_of(t * tile_h, tile_h)
    # Halo window for this row tile: tile_h output rows need tile_h+2 padded rows.
    xw = x_ref[0, pl.ds(row0, tile_h + 2), :, :]        # (tile_h+2, W+2, Cin_p) bf16

    # im2col in bf16: stack the 3x3 taps along the channel (lane) axis, then
    # zero-pad K up to a multiple of 128 so the slab is full-lane.
    cols = [xw[dh:dh + tile_h, dw:dw + W, :] for dh in range(3) for dw in range(3)]
    if k_p > k_real:
        cols.append(jnp.zeros((tile_h, W, k_p - k_real), dtype=xw.dtype))
    patches = jnp.concatenate(cols, axis=-1)            # (tile_h, W, K_p) bf16
    patches = patches.reshape(tile_h * W, k_p)          # (tile_h*W, K_p)

    # Single MXU matmul per row tile: bf16 operands, f32 accumulation.
    acc = jnp.dot(patches, w_ref[...],
                  preferred_element_type=jnp.float32)   # (tile_h*W, Cout_p) f32

    acc = acc + b_ref[...]                              # bias (broadcast over rows)
    acc = jnp.where(acc >= 0, acc, negative_slope * acc)  # LeakyReLU (f32)

    o_ref[0] = acc.astype(o_ref.dtype)                  # lane-dense bf16 store


def conv_block_forward(x_nchw, weight_hwio, bias, *, negative_slope=0.2,
                       max_tile_rows=1024):
    """ConvBlock forward: Conv2d(k=3, s=1, p=1) + LeakyReLU(negative_slope).

    x_nchw:      (N, Cin, H, W)    float32 (PyTorch layout)
    weight_hwio: (3, 3, Cin, Cout) float32
    bias:        (Cout,)           float32
    returns:     (N, Cout, H, W)   float32
    """
    N, Cin, H, W = x_nchw.shape
    kh, kw, wcin, Cout = weight_hwio.shape
    assert (kh, kw) == (3, 3) and wcin == Cin

    Cin_p = _round_up(Cin, 8)         # sublane-friendly channel pad
    Cout_p = _round_up(Cout, 128)     # full-lane matmul N dim / unmasked store
    K = 9 * Cin_p
    K_p = _round_up(K, 128)           # full-lane im2col K

    TILE_H = _pick_tile_h(H, W, max_rows=max_tile_rows)
    NT = H // TILE_H
    TILE_ROWS = TILE_H * W

    # NCHW -> NHWC, spatial pad 1 (the conv's padding=1) + channel pad, bf16.
    x_nhwc = jnp.transpose(x_nchw, (0, 2, 3, 1))
    x_pad = jnp.pad(x_nhwc, ((0, 0), (1, 1), (1, 1), (0, Cin_p - Cin)))
    x_pad = x_pad.astype(jnp.bfloat16)

    # (3,3,Cin,Cout) -> channel pad -> (9*Cin_p, Cout_p) -> K pad -> bf16.
    w_pad = jnp.pad(weight_hwio,
                    ((0, 0), (0, 0), (0, Cin_p - Cin), (0, Cout_p - Cout)))
    w2d = w_pad.reshape(K, Cout_p)
    w2d = jnp.pad(w2d, ((0, K_p - K), (0, 0))).astype(jnp.bfloat16)
    b2d = jnp.pad(bias, (0, Cout_p - Cout)).reshape(1, Cout_p).astype(jnp.float32)

    kernel = functools.partial(_conv_block_kernel, tile_h=TILE_H, W=W,
                               negative_slope=float(negative_slope))

    flops = 2 * N * H * W * (9 * Cin) * Cout
    bytes_accessed = (x_pad.size * 2 + w2d.size * 2 + b2d.size * 4
                      + N * H * W * Cout_p * 2)

    out_flat = pl.pallas_call(
        kernel,
        out_shape=jax.ShapeDtypeStruct((N, H * W, Cout_p), jnp.bfloat16),
        grid_spec=pltpu.PrefetchScalarGridSpec(
            num_scalar_prefetch=0,
            grid=(N, NT),
            in_specs=[
                # Full padded image; same block index across the tile axis so it
                # stays resident in VMEM (one DMA per batch element).
                pl.BlockSpec((1, H + 2, W + 2, Cin_p), lambda n, t: (n, 0, 0, 0)),
                pl.BlockSpec((K_p, Cout_p), lambda n, t: (0, 0)),
                pl.BlockSpec((1, Cout_p), lambda n, t: (0, 0)),
            ],
            out_specs=pl.BlockSpec((1, TILE_ROWS, Cout_p), lambda n, t: (n, t, 0)),
        ),
        compiler_params=pltpu.CompilerParams(
            dimension_semantics=("parallel", "parallel")),
        cost_estimate=pl.CostEstimate(flops=flops, transcendentals=0,
                                      bytes_accessed=bytes_accessed),
    )(x_pad, w2d, b2d)

    # Un-pad channels, back to NCHW to match the PyTorch module.
    out_nhwc = out_flat.reshape(N, H, W, Cout_p)[..., :Cout]
    return jnp.transpose(out_nhwc, (0, 3, 1, 2)).astype(x_nchw.dtype)


def _reference_conv_block(x_nchw, weight_hwio, bias, negative_slope=0.2):
    """Pure-JAX reference (lax conv) for correctness checking."""
    w_oihw = jnp.transpose(weight_hwio, (3, 2, 0, 1))
    out = jax.lax.conv_general_dilated(
        x_nchw, w_oihw, window_strides=(1, 1), padding=((1, 1), (1, 1)),
        dimension_numbers=("NCHW", "OIHW", "NCHW"),
        precision=jax.lax.Precision.HIGHEST)
    out = out + bias.reshape(1, -1, 1, 1)
    return jnp.where(out >= 0, out, negative_slope * out)


if __name__ == "__main__":
    key = jax.random.PRNGKey(0)
    kx, kw_, kb = jax.random.split(key, 3)

    # Small shapes consistent with the module: batch=2, Cin=4, Cout=8, 16x16.
    N, Cin, Cout, H, W = 2, 4, 8, 16, 16

    x = jax.random.normal(kx, (N, Cin, H, W), dtype=jnp.float32)
    weight = jax.random.normal(kw_, (3, 3, Cin, Cout), dtype=jnp.float32) * 0.1
    bias = jax.random.normal(kb, (Cout,), dtype=jnp.float32) * 0.1

    out = jax.block_until_ready(conv_block_forward(x, weight, bias))

    # The kernel feeds the MXU bf16 operands (f32 accumulation) and stores the
    # result as bf16, so compare against the f32 reference evaluated on
    # bf16-rounded inputs and rounded to bf16 at the output: only summation
    # order then differs.
    x_q = x.astype(jnp.bfloat16).astype(jnp.float32)
    w_q = weight.astype(jnp.bfloat16).astype(jnp.float32)
    ref = _reference_conv_block(x_q, w_q, bias)
    ref_q = jax.block_until_ready(ref.astype(jnp.bfloat16).astype(jnp.float32))

    assert out.shape == (N, Cout, H, W)
    assert jnp.allclose(out, ref_q, atol=2e-2, rtol=2e-2), "mismatch vs reference"

    print("KERNEL_OK")
</pallas_src>

<mosaic_0001>
module attributes {stable_mosaic.version = 11 : i64} {
  func.func @_conv_block_kernel(%arg0: i32, %arg1: i32, %arg2: memref<1x18x18x8xbf16, #tpu.memory_space<vmem>>, %arg3: memref<128x128xbf16, #tpu.memory_space<vmem>>, %arg4: memref<1x128xf32, #tpu.memory_space<vmem>>, %arg5: memref<1x256x128xbf16, #tpu.memory_space<vmem>>) attributes {dimension_semantics = [#tpu.dimension_semantics<parallel>, #tpu.dimension_semantics<parallel>], iteration_bounds = array<i64: 2, 1>, scalar_prefetch = 0 : i64, scratch_operands = 0 : i64, tpu.core_type = #tpu.core_type<tc>, window_params = [{transform_indices = @transform_0, window_bounds = array<i64: 1, 18, 18, 8>}, {pipeline_mode = #tpu.pipeline_mode<synchronous>, transform_indices = @transform_1, window_bounds = array<i64: 128, 128>}, {pipeline_mode = #tpu.pipeline_mode<synchronous>, transform_indices = @transform_2, window_bounds = array<i64: 1, 128>}, {transform_indices = @transform_3, window_bounds = array<i64: 1, 256, 128>}]} {
    %c16_i32 = arith.constant 16 : i32
    %0 = arith.muli %arg1, %c16_i32 : i32
    %1 = tpu.assume_multiple %0, 16 : i32
    %c0 = arith.constant 0 : index
    %2 = arith.index_cast %1 : i32 to index
    %c0_0 = arith.constant 0 : index
    %c0_1 = arith.constant 0 : index
    %3 = vector.load %arg2[%c0, %2, %c0_0, %c0_1] : memref<1x18x18x8xbf16, #tpu.memory_space<vmem>>, vector<1x18x18x8xbf16>
    %4 = vector.shape_cast %3 : vector<1x18x18x8xbf16> to vector<18x18x8xbf16>
    %5 = vector.extract_strided_slice %4 {offsets = [0, 0, 0], sizes = [16, 16, 8], strides = [1, 1, 1]} : vector<18x18x8xbf16> to vector<16x16x8xbf16>
    %6 = vector.extract_strided_slice %4 {offsets = [0, 1, 0], sizes = [16, 16, 8], strides = [1, 1, 1]} : vector<18x18x8xbf16> to vector<16x16x8xbf16>
    %7 = vector.extract_strided_slice %4 {offsets = [0, 2, 0], sizes = [16, 16, 8], strides = [1, 1, 1]} : vector<18x18x8xbf16> to vector<16x16x8xbf16>
    %8 = vector.extract_strided_slice %4 {offsets = [1, 0, 0], sizes = [16, 16, 8], strides = [1, 1, 1]} : vector<18x18x8xbf16> to vector<16x16x8xbf16>
    %9 = vector.extract_strided_slice %4 {offsets = [1, 1, 0], sizes = [16, 16, 8], strides = [1, 1, 1]} : vector<18x18x8xbf16> to vector<16x16x8xbf16>
    %10 = vector.extract_strided_slice %4 {offsets = [1, 2, 0], sizes = [16, 16, 8], strides = [1, 1, 1]} : vector<18x18x8xbf16> to vector<16x16x8xbf16>
    %11 = vector.extract_strided_slice %4 {offsets = [2, 0, 0], sizes = [16, 16, 8], strides = [1, 1, 1]} : vector<18x18x8xbf16> to vector<16x16x8xbf16>
    %12 = vector.extract_strided_slice %4 {offsets = [2, 1, 0], sizes = [16, 16, 8], strides = [1, 1, 1]} : vector<18x18x8xbf16> to vector<16x16x8xbf16>
    %13 = vector.extract_strided_slice %4 {offsets = [2, 2, 0], sizes = [16, 16, 8], strides = [1, 1, 1]} : vector<18x18x8xbf16> to vector<16x16x8xbf16>
    %cst = arith.constant 0.000000e+00 : bf16
    %14 = vector.broadcast %cst : bf16 to vector<16x16x56xbf16>
    %15 = tpu.concatenate %5, %6, %7, %8, %9, %10, %11, %12, %13, %14 in 2 : vector<16x16x8xbf16>, vector<16x16x8xbf16>, vector<16x16x8xbf16>, vector<16x16x8xbf16>, vector<16x16x8xbf16>, vector<16x16x8xbf16>, vector<16x16x8xbf16>, vector<16x16x8xbf16>, vector<16x16x8xbf16>, vector<16x16x56xbf16> -> vector<16x16x128xbf16>
    %16 = vector.shape_cast %15 : vector<16x16x128xbf16> to vector<256x128xbf16>
    %c0_2 = arith.constant 0 : index
    %c0_3 = arith.constant 0 : index
    %17 = vector.load %arg3[%c0_2, %c0_3] : memref<128x128xbf16, #tpu.memory_space<vmem>>, vector<128x128xbf16>
    %cst_4 = arith.constant dense<0.000000e+00> : vector<256x128xf32>
    %18 = tpu.matmul %16, %17, %cst_4 {dimension_numbers = #tpu.dot_dimension_numbers<[1], [0], [0], [1], [0, 0, 1, 1], [], []>} : vector<256x128xbf16>, vector<128x128xbf16>, vector<256x128xf32> -> vector<256x128xf32>
    %c0_5 = arith.constant 0 : index
    %c0_6 = arith.constant 0 : index
    %19 = vector.load %arg4[%c0_5, %c0_6] : memref<1x128xf32, #tpu.memory_space<vmem>>, vector<1x128xf32>
    %20 = vector.broadcast %19 : vector<1x128xf32> to vector<256x128xf32>
    %21 = arith.addf %18, %20 : vector<256x128xf32>
    %cst_7 = arith.constant 0.000000e+00 : f32
    %22 = vector.broadcast %cst_7 : f32 to vector<256x128xf32>
    %23 = arith.cmpf oge, %21, %22 : vector<256x128xf32>
    %cst_8 = arith.constant 2.000000e-01 : f32
    %24 = vector.broadcast %cst_8 : f32 to vector<256x128xf32>
    %25 = arith.mulf %24, %21 : vector<256x128xf32>
    %26 = arith.select %23, %21, %25 : vector<256x128xi1>, vector<256x128xf32>
    %27 = arith.truncf %26 : vector<256x128xf32> to vector<256x128xbf16>
    %c0_9 = arith.constant 0 : index
    %c0_10 = arith.constant 0 : index
    %c0_11 = arith.constant 0 : index
    %28 = vector.load %arg5[%c0_9, %c0_10, %c0_11] : memref<1x256x128xbf16, #tpu.memory_space<vmem>>, vector<1x256x128xbf16>
    %29 = vector.shape_cast %28 : vector<1x256x128xbf16> to vector<256x128xbf16>
    %30 = vector.shape_cast %27 : vector<256x128xbf16> to vector<1x256x128xbf16>
    tpu.vector_store %arg5[%c0_9, %c0_10, %c0_11], %30 {strides = array<i32>} : memref<1x256x128xbf16, #tpu.memory_space<vmem>>, vector<1x256x128xbf16>,
    return
  }
  func.func @transform_0(%arg0: i32, %arg1: i32) -> (i32, i32, i32, i32) {
    %c0_i32 = arith.constant 0 : i32
    %c0_i32_0 = arith.constant 0 : i32
    %c0_i32_1 = arith.constant 0 : i32
    %c0_i32_2 = arith.constant 0 : i32
    return %arg0, %c0_i32, %c0_i32_0, %c0_i32_1 : i32, i32, i32, i32
  }
  func.func @transform_1(%arg0: i32, %arg1: i32) -> (i32, i32) {
    %c0_i32 = arith.constant 0 : i32
    %c0_i32_0 = arith.constant 0 : i32
    %c0_i32_1 = arith.constant 0 : i32
    return %c0_i32, %c0_i32_0 : i32, i32
  }
  func.func @transform_2(%arg0: i32, %arg1: i32) -> (i32, i32) {
    %c0_i32 = arith.constant 0 : i32
    %c0_i32_0 = arith.constant 0 : i32
    %c0_i32_1 = arith.constant 0 : i32
    return %c0_i32, %c0_i32_0 : i32, i32
  }
  func.func @transform_3(%arg0: i32, %arg1: i32) -> (i32, i32, i32) {
    %c0_i32 = arith.constant 0 : i32
    %c0_i32_0 = arith.constant 0 : i32
    return %arg0, %arg1, %c0_i32 : i32, i32, i32
  }
}

</mosaic_0001>

<llo_original>
// kernel: tpu_custom_call.1
$region0: #{tpu_custom_call.1}
  #allocation0 [shape = 'u32[]', space=smem, size = 0x4, offset = 0x4, fixed_abs, tag = 'smem constant byte address 0x4 - core index']
  #allocation1 [shape = 'u32[144,128]{1,0:T(1,128)}', space=vmem, size = 0x12000, scoped, tag = 'internal scratch']
  %s0 = inlined_call_operand.vmem [shape: bf16[2,18,18,8], index: 0, kind: input, shape index: {}]
  %s1 = inlined_call_operand.vmem [shape: bf16[128,128], index: 1, kind: input, shape index: {}]
  %s2 = inlined_call_operand.vmem [shape: f32[1,128], index: 2, kind: input, shape index: {}]
  %s3 = inlined_call_operand.hbm [shape: bf16[2,256,128], index: 3, kind: output, shape index: {}]
  %s4 = sld [smem:[#allocation0]]
  $region45: #{tpu_custom_call.1} parent=0
    _
  %s6 = ssub.s32 1, %s4
  %s7 = scalar_select 0, %s6, %s4
  $region1: #{tpu_custom_call.1} parent=0
    #allocation2 [shape = 'u8[131072]{0}', space=vmem, size = 0x20000, scoped, tag = 'output window, operand 0']
    #allocation3 [shape = 's32[2]{0}', space=sflag, size = 0x8, scoped, tag = 'scoped memory for tpu_custom_call.1']
    %8 = vsyncpa [#allocation3], 0
    %s9 = scalar_lea.sflag [#allocation3], 1
    %10 = vsyncpa %s9, 0
    loop: start=0, step=1, limit=4
    $region2: #{tpu_custom_call.1} parent=1 // loop_pre_header
      _
    $region3: #{tpu_custom_call.1} parent=1 // loop_header
      %s12 = sphi 0, %s16
      %p13 = scmp.ge.s32.totalorder %s12, 4
      %s19 = sphi 0, %s31
      %s20 = sphi 0, %s27
      %s21 = sphi 0, %s19
      %s22 = sphi 0, %s20
      %s23 = sphi 0, %s21
      %s24 = sphi 0, %s22
      %s34 = sphi 0, %s36
      %s37 = sphi 0, %s34
      %s38 = sphi 0, %s37
      %s54 = sphi 0, %s38
      %s58 = sphi 0, %s58
      %s60 = sphi 0, %s58
      %s61 = sphi 0, %s60
      %s75 = sphi 0, %s61
      %s79 = sphi 0, %s79
      %s81 = sphi 0, %s79
      %s82 = sphi 0, %s81
      %s96 = sphi 0, %s82
      %s104 = sphi 0, %s106
      %s107 = sphi 0, %s104
      %s108 = sphi 0, %s107
      %s124 = sphi 0, %s108
    $region4: #{tpu_custom_call.1} parent=1 // loop_header_branch
      %15 = sbr.rel (%p13) target = $region8
    $region5: #{tpu_custom_call.1} parent=1 // loop_body
      %s17 = ssub.s32 %s12, 1
      %s18 = ssub.s32 %s12, 2
      %s25 = sadd.s32 1, %s20
      %p26 = scmp.ge.s32.totalorder %s25, 1
      %s27 = scalar_select %p26, 0, %s25
      %s28 = sadd.s32 1, %s19
      %s29 = scalar_select %p26, %s28, %s19
      %p30 = scmp.ge.s32.totalorder %s29, 2
      %s31 = scalar_select %p30, 0, %s29
      %s32 = ssub.s32 %s19, %s31
      %p33 = scmp.eq.s32.totalorder %s32, 0
      %s35 = sadd.s32 %s34, 1
      %s36 = scalar_select %p33, %s34, %s35
      %p39 = pneg %p33
      %p40 = scmp.eq.s32.totalorder %s12, 1
      %p41 = por %p39, %p40
      %p42 = scmp.ne.s32.totalorder %s34, %s37
      %p43 = scmp.eq.s32.totalorder %s12, 0
      %p44 = por %p42, %p43
      %p45 = scmp.ne.s32.totalorder %s34, %s37
      %p46 = scmp.eq.s32.totalorder %s17, 1
      %p47 = por %p45, %p46
      %p48 = scmp.ne.s32.totalorder %s37, %s38
      %p49 = scmp.eq.s32.totalorder %s17, 0
      %p50 = por %p48, %p49
      %p51 = scmp.ne.s32.totalorder %s37, %s38
      %p52 = scmp.eq.s32.totalorder %s18, 1
      %p53 = por %p51, %p52
      %p55 = scmp.ne.s32.totalorder %s38, %s54
      %p56 = scmp.eq.s32.totalorder %s18, 0
      %p57 = por %p55, %p56
      %s59 = sadd.s32 %s58, 1
      %p62 = scmp.eq.s32.totalorder %s12, 1
      %p63 = scmp.ne.s32.totalorder %s58, %s60
      %p64 = scmp.eq.s32.totalorder %s12, 0
      %p65 = por %p63, %p64
      %p66 = scmp.ne.s32.totalorder %s58, %s60
      %p67 = scmp.eq.s32.totalorder %s17, 1
      %p68 = por %p66, %p67
      %p69 = scmp.ne.s32.totalorder %s60, %s61
      %p70 = scmp.eq.s32.totalorder %s17, 0
      %p71 = por %p69, %p70
      %p72 = scmp.ne.s32.totalorder %s60, %s61
      %p73 = scmp.eq.s32.totalorder %s18, 1
      %p74 = por %p72, %p73
      %p76 = scmp.ne.s32.totalorder %s61, %s75
      %p77 = scmp.eq.s32.totalorder %s18, 0
      %p78 = por %p76, %p77
      %s80 = sadd.s32 %s79, 1
      %p83 = scmp.eq.s32.totalorder %s12, 1
      %p84 = scmp.ne.s32.totalorder %s79, %s81
      %p85 = scmp.eq.s32.totalorder %s12, 0
      %p86 = por %p84, %p85
      %p87 = scmp.ne.s32.totalorder %s79, %s81
      %p88 = scmp.eq.s32.totalorder %s17, 1
      %p89 = por %p87, %p88
      %p90 = scmp.ne.s32.totalorder %s81, %s82
      %p91 = scmp.eq.s32.totalorder %s17, 0
      %p92 = por %p90, %p91
      %p93 = scmp.ne.s32.totalorder %s81, %s82
      %p94 = scmp.eq.s32.totalorder %s18, 1
      %p95 = por %p93, %p94
      %p97 = scmp.ne.s32.totalorder %s82, %s96
      %p98 = scmp.eq.s32.totalorder %s18, 0
      %p99 = por %p97, %p98
      %s100 = ssub.s32 %s19, %s31
      %s101 = ssub.s32 %s20, %s27
      %s102 = sor.u32 %s100, %s101
      %p103 = scmp.eq.s32.totalorder %s102, 0
      %s105 = sadd.s32 %s104, 1
      %s106 = scalar_select %p103, %s104, %s105
      %p109 = pneg %p103
      %p110 = scmp.eq.s32.totalorder %s12, 1
      %p111 = por %p109, %p110
      %p112 = scmp.ne.s32.totalorder %s104, %s107
      %p113 = scmp.eq.s32.totalorder %s12, 0
      %p114 = por %p112, %p113
      %p115 = scmp.ne.s32.totalorder %s104, %s107
      %p116 = scmp.eq.s32.totalorder %s17, 1
      %p117 = por %p115, %p116
      %p118 = scmp.ne.s32.totalorder %s107, %s108
      %p119 = scmp.eq.s32.totalorder %s17, 0
      %p120 = por %p118, %p119
      %p121 = scmp.ne.s32.totalorder %s107, %s108
      %p122 = scmp.eq.s32.totalorder %s18, 1
      %p123 = por %p121, %p122
      %p125 = scmp.ne.s32.totalorder %s108, %s124
      %p126 = scmp.eq.s32.totalorder %s18, 0
      %p127 = por %p125, %p126
      %p128 = scmp.le.s32.totalorder 1, %s12
      %p129 = scmp.lt.s32.totalorder %s12, 3
      %p130 = pnand %p128, %p129
      %p131 = pneg %p130
      // Predicated region
      $region9: #{tpu_custom_call.1} parent=5 // pred_check
        _
      $region10: #{tpu_custom_call.1} parent=5 // pred_check_branch
        %133 = sbr.rel (%p130) target = $region12
      $region11: #{tpu_custom_call.1} parent=5 // pred_region
        %s134 = ssub.s32 %s12, 1
        // Predicated region
        $region13: #{tpu_custom_call.1} parent=11 // pred_check
          %p135 = pneg %p71
        $region14: #{tpu_custom_call.1} parent=11 // pred_check_branch
          %137 = sbr.rel (%p135) target = $region16
        $region15: #{tpu_custom_call.1} parent=11 // pred_region
          _
        $region16: #{tpu_custom_call.1} parent=11 // pred_fallthru
          _
        // Predicated region
        $region17: #{tpu_custom_call.1} parent=11 // pred_check
          %p138 = pneg %p92
        $region18: #{tpu_custom_call.1} parent=11 // pred_check_branch
          %140 = sbr.rel (%p138) target = $region20
        $region19: #{tpu_custom_call.1} parent=11 // pred_region
          _
        $region20: #{tpu_custom_call.1} parent=11 // pred_fallthru
          _
      $region12: #{tpu_custom_call.1} parent=5 // pred_fallthru
        _
      %p141 = scmp.lt.s32.totalorder %s12, 2
      // Predicated region
      $region21: #{tpu_custom_call.1} parent=5 // pred_check
        %p142 = pneg %p141
      $region22: #{tpu_custom_call.1} parent=5 // pred_check_branch
        %144 = sbr.rel (%p142) target = $region24
      $region23: #{tpu_custom_call.1} parent=5 // pred_region
        // Predicated region
        $region25: #{tpu_custom_call.1} parent=23 // pred_check
          %p145 = pneg %p44
        $region26: #{tpu_custom_call.1} parent=23 // pred_check_branch
          %147 = sbr.rel (%p145) target = $region28
        $region27: #{tpu_custom_call.1} parent=23 // pred_region
          %p148 = scmp.lt.s32.totalorder %s19, 1
          %s149 = scalar_select %p148, %s19, 1
          %s150 = smul.addr %s149, 54
          %s151 = smul.addr %s150, 4
          %s152 = scalar_lea.vmem %s0, %s151
        $region28: #{tpu_custom_call.1} parent=23 // pred_fallthru
          _
      $region24: #{tpu_custom_call.1} parent=5 // pred_fallthru
        _
      %p153 = scmp.le.s32.totalorder 1, %s12
      %p154 = scmp.lt.s32.totalorder %s12, 3
      %p155 = pnand %p153, %p154
      %p156 = pneg %p155
      // Predicated region
      $region29: #{tpu_custom_call.1} parent=5 // pred_check
        _
      $region30: #{tpu_custom_call.1} parent=5 // pred_check_branch
        %158 = sbr.rel (%p155) target = $region32
      $region31: #{tpu_custom_call.1} parent=5 // pred_region
        %s159 = ssub.s32 %s12, 1
        %p160 = scmp.lt.s32.totalorder %s21, 1
        %s161 = scalar_select %p160, %s21, 1
        %s162 = smul.addr %s161, 54
        %s163 = smul.addr %s162, 4
        %s164 = scalar_lea.vmem %s0, %s163
        %p165 = pneg %p50
        %p166 = pneg %p47
        %p167 = pneg %p71
        %p168 = pneg %p68
        %p169 = pneg %p92
        %p170 = pneg %p89
        %p171 = pneg %p120
        %p172 = pneg %p117
        %s173 = sand.u32 %s107, 1
        %s174 = scalar_lea.sflag [#allocation3], %s173
        %s175 = sand.u32 %s107, 1
        %s176 = smul.addr %s175, 128
        %s177 = scalar_lea.vmem [#allocation2], %s176
        %p178 = scmp.lt.s32.totalorder %s21, 1
        %s179 = scalar_select %p178, %s21, 1
        %s180 = smul.addr %s179, 54
        %s181 = smul.addr %s180, 4
        %s182 = scalar_lea.vmem %s0, %s181
        %s183 = smul.u32 32, %s22
        %s185 = smul.u32 %s22, 16
        %s186 = smul.u32 %s185, 3
        %s187 = smul.addr %s186, 4
        %s188 = scalar_lea.vmem %s182, %s187
        %v189 = vld [vmem:[%s188] sm:$0xf]
        %v190 = vld [vmem:[%s188 + $0x4] sm:$0xf]
        %v191 = vld [vmem:[%s188 + $0x8] sm:$0x1]
        %v192 = vld [vmem:[%s188 + $0xc] sm:$0xf]
        %v193 = vld [vmem:[%s188 + $0x10] sm:$0xf]
        %v194 = vld [vmem:[%s188 + $0x14] sm:$0x1]
        %v195 = vld [vmem:[%s188 + $0x18] sm:$0xf]
        %v196 = vld [vmem:[%s188 + $0x1c] sm:$0xf]
        %v197 = vld [vmem:[%s188 + $0x20] sm:$0x1]
        %v198 = vld [vmem:[%s188 + $0x24] sm:$0xf]
        %v199 = vld [vmem:[%s188 + $0x28] sm:$0xf]
        %v200 = vld [vmem:[%s188 + $0x2c] sm:$0x1]
        %v201 = vld [vmem:[%s188 + $0x30] sm:$0xf]
        %v202 = vld [vmem:[%s188 + $0x34] sm:$0xf]
        %v203 = vld [vmem:[%s188 + $0x38] sm:$0x1]
        %v204 = vld [vmem:[%s188 + $0x3c] sm:$0xf]
        %v205 = vld [vmem:[%s188 + $0x40] sm:$0xf]
        %v206 = vld [vmem:[%s188 + $0x44] sm:$0x1]
        %v207 = vld [vmem:[%s188 + $0x48] sm:$0xf]
        %v208 = vld [vmem:[%s188 + $0x4c] sm:$0xf]
        %v209 = vld [vmem:[%s188 + $0x50] sm:$0x1]
        %v210 = vld [vmem:[%s188 + $0x54] sm:$0xf]
        %v211 = vld [vmem:[%s188 + $0x58] sm:$0xf]
        %v212 = vld [vmem:[%s188 + $0x5c] sm:$0x1]
        %v213 = vld [vmem:[%s188 + $0x60] sm:$0xf]
        %v214 = vld [vmem:[%s188 + $0x64] sm:$0xf]
        %v215 = vld [vmem:[%s188 + $0x68] sm:$0x1]
        %v216 = vld [vmem:[%s188 + $0x6c] sm:$0xf]
        %v217 = vld [vmem:[%s188 + $0x70] sm:$0xf]
        %v218 = vld [vmem:[%s188 + $0x74] sm:$0x1]
        %v219 = vld [vmem:[%s188 + $0x78] sm:$0xf]
        %v220 = vld [vmem:[%s188 + $0x7c] sm:$0xf]
        %v221 = vld [vmem:[%s188 + $0x80] sm:$0x1]
        %v222 = vld [vmem:[%s188 + $0x84] sm:$0xf]
        %v223 = vld [vmem:[%s188 + $0x88] sm:$0xf]
        %v224 = vld [vmem:[%s188 + $0x8c] sm:$0x1]
        %v225 = vld [vmem:[%s188 + $0x90] sm:$0xf]
        %v226 = vld [vmem:[%s188 + $0x94] sm:$0xf]
        %v227 = vld [vmem:[%s188 + $0x98] sm:$0x1]
        %v228 = vld [vmem:[%s188 + $0x9c] sm:$0xf]
        %v229 = vld [vmem:[%s188 + $0xa0] sm:$0xf]
        %v230 = vld [vmem:[%s188 + $0xa4] sm:$0x1]
        %v231 = vld [vmem:[%s188 + $0xa8] sm:$0xf]
        %v232 = vld [vmem:[%s188 + $0xac] sm:$0xf]
        %v233 = vld [vmem:[%s188 + $0xb0] sm:$0x1]
        %v234 = vld [vmem:[%s188 + $0xb4] sm:$0xf]
        %v235 = vld [vmem:[%s188 + $0xb8] sm:$0xf]
        %v236 = vld [vmem:[%s188 + $0xbc] sm:$0x1]
        %v237 = vld [vmem:[%s188 + $0xc0] sm:$0xf]
        %v238 = vld [vmem:[%s188 + $0xc4] sm:$0xf]
        %v239 = vld [vmem:[%s188 + $0xc8] sm:$0x1]
        %v240 = vld [vmem:[%s188 + $0xcc] sm:$0xf]
        %v241 = vld [vmem:[%s188 + $0xd0] sm:$0xf]
        %v242 = vld [vmem:[%s188 + $0xd4] sm:$0x1]
        %v275 = vunpack.c.l.b16 %v189
        %v276 = vunpack.c.l.b16 %v190
        %v277 = vunpack.c.l.b16 %v192
        %v278 = vunpack.c.l.b16 %v193
        %v279 = vunpack.c.l.b16 %v195
        %v280 = vunpack.c.l.b16 %v196
        %v281 = vunpack.c.l.b16 %v198
        %v282 = vunpack.c.l.b16 %v199
        %v283 = vunpack.c.l.b16 %v201
        %v284 = vunpack.c.l.b16 %v202
        %v285 = vunpack.c.l.b16 %v204
        %v286 = vunpack.c.l.b16 %v205
        %v287 = vunpack.c.l.b16 %v207
        %v288 = vunpack.c.l.b16 %v208
        %v289 = vunpack.c.l.b16 %v210
        %v290 = vunpack.c.l.b16 %v211
        %v291 = vunpack.c.l.b16 %v213
        %v292 = vunpack.c.l.b16 %v214
        %v293 = vunpack.c.l.b16 %v216
        %v294 = vunpack.c.l.b16 %v217
        %v295 = vunpack.c.l.b16 %v219
        %v296 = vunpack.c.l.b16 %v220
        %v297 = vunpack.c.l.b16 %v222
        %v298 = vunpack.c.l.b16 %v223
        %v299 = vunpack.c.l.b16 %v225
        %v300 = vunpack.c.l.b16 %v226
        %v301 = vunpack.c.l.b16 %v228
        %v302 = vunpack.c.l.b16 %v229
        %v303 = vunpack.c.l.b16 %v231
        %v304 = vunpack.c.l.b16 %v232
        %v305 = vunpack.c.l.b16 %v234
        %v306 = vunpack.c.l.b16 %v235
        %v307 = vpack.c.b16 %v276, %v275
        %v308 = vpack.c.b16 %v278, %v277
        %v309 = vpack.c.b16 %v280, %v279
        %v310 = vpack.c.b16 %v282, %v281
        %v311 = vpack.c.b16 %v284, %v283
        %v312 = vpack.c.b16 %v286, %v285
        %v313 = vpack.c.b16 %v288, %v287
        %v314 = vpack.c.b16 %v290, %v289
        %v315 = vpack.c.b16 %v292, %v291
        %v316 = vpack.c.b16 %v294, %v293
        %v317 = vpack.c.b16 %v296, %v295
        %v318 = vpack.c.b16 %v298, %v297
        %v319 = vpack.c.b16 %v300, %v299
        %v320 = vpack.c.b16 %v302, %v301
        %v321 = vpack.c.b16 %v304, %v303
        %v322 = vpack.c.b16 %v306, %v305
        %v339 = vunpack.c.l.b16 %v191
        %v340 = vunpack.c.l.b16 %v194
        %v341 = vunpack.c.l.b16 %v197
        %v342 = vunpack.c.l.b16 %v200
        %v343 = vunpack.c.l.b16 %v203
        %v344 = vunpack.c.l.b16 %v206
        %v345 = vunpack.c.l.b16 %v209
        %v346 = vunpack.c.l.b16 %v212
        %v347 = vunpack.c.l.b16 %v215
        %v348 = vunpack.c.l.b16 %v218
        %v349 = vunpack.c.l.b16 %v221
        %v350 = vunpack.c.l.b16 %v224
        %v351 = vunpack.c.l.b16 %v227
        %v352 = vunpack.c.l.b16 %v230
        %v353 = vunpack.c.l.b16 %v233
        %v354 = vunpack.c.l.b16 %v236
        %v355 = vpack.c.b16 %v339, %v339
        %v356 = vpack.c.b16 %v340, %v340
        %v357 = vpack.c.b16 %v341, %v341
        %v358 = vpack.c.b16 %v342, %v342
        %v359 = vpack.c.b16 %v343, %v343
        %v360 = vpack.c.b16 %v344, %v344
        %v361 = vpack.c.b16 %v345, %v345
        %v362 = vpack.c.b16 %v346, %v346
        %v363 = vpack.c.b16 %v347, %v347
        %v364 = vpack.c.b16 %v348, %v348
        %v365 = vpack.c.b16 %v349, %v349
        %v366 = vpack.c.b16 %v350, %v350
        %v367 = vpack.c.b16 %v351, %v351
        %v368 = vpack.c.b16 %v352, %v352
        %v369 = vpack.c.b16 %v353, %v353
        %v370 = vpack.c.b16 %v354, %v354
        %vm371 = vsmask.f32 7424
        %v373 = vshrl.u32 %v307, 16
        %v375 = vshll.u32 %v307, 16
        %v377 = vrot.slane %v375, 1
        %v378 = vor.u32 %v373, %v377
        %v380 = vshll.u32 %v355, 16
        %v382 = vrot.slane %v380, 1
        %v383 = vsel %vm371, %v378, %v382
        %v385 = vshrl.u32 %v308, 16
        %v387 = vshll.u32 %v308, 16
        %v389 = vrot.slane %v387, 1
        %v390 = vor.u32 %v385, %v389
        %v392 = vshll.u32 %v356, 16
        %v394 = vrot.slane %v392, 1
        %v395 = vsel %vm371, %v390, %v394
        %v397 = vshrl.u32 %v309, 16
        %v399 = vshll.u32 %v309, 16
        %v401 = vrot.slane %v399, 1
        %v402 = vor.u32 %v397, %v401
        %v404 = vshll.u32 %v357, 16
        %v406 = vrot.slane %v404, 1
        %v407 = vsel %vm371, %v402, %v406
        %v409 = vshrl.u32 %v310, 16
        %v411 = vshll.u32 %v310, 16
        %v413 = vrot.slane %v411, 1
        %v414 = vor.u32 %v409, %v413
        %v416 = vshll.u32 %v358, 16
        %v418 = vrot.slane %v416, 1
        %v419 = vsel %vm371, %v414, %v418
        %v421 = vshrl.u32 %v311, 16
        %v423 = vshll.u32 %v311, 16
        %v425 = vrot.slane %v423, 1
        %v426 = vor.u32 %v421, %v425
        %v428 = vshll.u32 %v359, 16
        %v430 = vrot.slane %v428, 1
        %v431 = vsel %vm371, %v426, %v430
        %v433 = vshrl.u32 %v312, 16
        %v435 = vshll.u32 %v312, 16
        %v437 = vrot.slane %v435, 1
        %v438 = vor.u32 %v433, %v437
        %v440 = vshll.u32 %v360, 16
        %v442 = vrot.slane %v440, 1
        %v443 = vsel %vm371, %v438, %v442
        %v445 = vshrl.u32 %v313, 16
        %v447 = vshll.u32 %v313, 16
        %v449 = vrot.slane %v447, 1
        %v450 = vor.u32 %v445, %v449
        %v452 = vshll.u32 %v361, 16
        %v454 = vrot.slane %v452, 1
        %v455 = vsel %vm371, %v450, %v454
        %v457 = vshrl.u32 %v314, 16
        %v459 = vshll.u32 %v314, 16
        %v461 = vrot.slane %v459, 1
        %v462 = vor.u32 %v457, %v461
        %v464 = vshll.u32 %v362, 16
        %v466 = vrot.slane %v464, 1
        %v467 = vsel %vm371, %v462, %v466
        %v469 = vshrl.u32 %v315, 16
        %v471 = vshll.u32 %v315, 16
        %v473 = vrot.slane %v471, 1
        %v474 = vor.u32 %v469, %v473
        %v476 = vshll.u32 %v363, 16
        %v478 = vrot.slane %v476, 1
        %v479 = vsel %vm371, %v474, %v478
        %v481 = vshrl.u32 %v316, 16
        %v483 = vshll.u32 %v316, 16
        %v485 = vrot.slane %v483, 1
        %v486 = vor.u32 %v481, %v485
        %v488 = vshll.u32 %v364, 16
        %v490 = vrot.slane %v488, 1
        %v491 = vsel %vm371, %v486, %v490
        %v493 = vshrl.u32 %v317, 16
        %v495 = vshll.u32 %v317, 16
        %v497 = vrot.slane %v495, 1
        %v498 = vor.u32 %v493, %v497
        %v500 = vshll.u32 %v365, 16
        %v502 = vrot.slane %v500, 1
        %v503 = vsel %vm371, %v498, %v502
        %v505 = vshrl.u32 %v318, 16
        %v507 = vshll.u32 %v318, 16
        %v509 = vrot.slane %v507, 1
        %v510 = vor.u32 %v505, %v509
        %v512 = vshll.u32 %v366, 16
        %v514 = vrot.slane %v512, 1
        %v515 = vsel %vm371, %v510, %v514
        %v517 = vshrl.u32 %v319, 16
        %v519 = vshll.u32 %v319, 16
        %v521 = vrot.slane %v519, 1
        %v522 = vor.u32 %v517, %v521
        %v524 = vshll.u32 %v367, 16
        %v526 = vrot.slane %v524, 1
        %v527 = vsel %vm371, %v522, %v526
        %v529 = vshrl.u32 %v320, 16
        %v531 = vshll.u32 %v320, 16
        %v533 = vrot.slane %v531, 1
        %v534 = vor.u32 %v529, %v533
        %v536 = vshll.u32 %v368, 16
        %v538 = vrot.slane %v536, 1
        %v539 = vsel %vm371, %v534, %v538
        %v541 = vshrl.u32 %v321, 16
        %v543 = vshll.u32 %v321, 16
        %v545 = vrot.slane %v543, 1
        %v546 = vor.u32 %v541, %v545
        %v548 = vshll.u32 %v369, 16
        %v550 = vrot.slane %v548, 1
        %v551 = vsel %vm371, %v546, %v550
        %v553 = vshrl.u32 %v322, 16
        %v555 = vshll.u32 %v322, 16
        %v557 = vrot.slane %v555, 1
        %v558 = vor.u32 %v553, %v557
        %v560 = vshll.u32 %v370, 16
        %v562 = vrot.slane %v560, 1
        %v563 = vsel %vm371, %v558, %v562
        %564 = vrot.lane.b32.xlu0 %v383, 8
        %v565 = vpop.permute.xlu0 %564
        %566 = vrot.lane.b32.xlu0 %v395, 8
        %v567 = vpop.permute.xlu0 %566
        %568 = vrot.lane.b32.xlu0 %v407, 8
        %v569 = vpop.permute.xlu0 %568
        %570 = vrot.lane.b32.xlu0 %v419, 8
        %v571 = vpop.permute.xlu0 %570
        %572 = vrot.lane.b32.xlu0 %v431, 8
        %v573 = vpop.permute.xlu0 %572
        %574 = vrot.lane.b32.xlu0 %v443, 8
        %v575 = vpop.permute.xlu0 %574
        %576 = vrot.lane.b32.xlu0 %v455, 8
        %v577 = vpop.permute.xlu0 %576
        %578 = vrot.lane.b32.xlu0 %v467, 8
        %v579 = vpop.permute.xlu0 %578
        %580 = vrot.lane.b32.xlu0 %v479, 8
        %v581 = vpop.permute.xlu0 %580
        %582 = vrot.lane.b32.xlu0 %v491, 8
        %v583 = vpop.permute.xlu0 %582
        %584 = vrot.lane.b32.xlu0 %v503, 8
        %v585 = vpop.permute.xlu0 %584
        %586 = vrot.lane.b32.xlu0 %v515, 8
        %v587 = vpop.permute.xlu0 %586
        %588 = vrot.lane.b32.xlu0 %v527, 8
        %v589 = vpop.permute.xlu0 %588
        %590 = vrot.lane.b32.xlu0 %v539, 8
        %v591 = vpop.permute.xlu0 %590
        %592 = vrot.lane.b32.xlu0 %v551, 8
        %v593 = vpop.permute.xlu0 %592
        %594 = vrot.lane.b32.xlu0 %v563, 8
        %v595 = vpop.permute.xlu0 %594
        %vm596 = vcmask 1046528
        %v597 = vrot.slane %v307, 1
        %v598 = vrot.slane %v355, 1
        %v599 = vsel %vm596, %v597, %v598
        %v600 = vrot.slane %v308, 1
        %v601 = vrot.slane %v356, 1
        %v602 = vsel %vm596, %v600, %v601
        %v603 = vrot.slane %v309, 1
        %v604 = vrot.slane %v357, 1
        %v605 = vsel %vm596, %v603, %v604
        %v606 = vrot.slane %v310, 1
        %v607 = vrot.slane %v358, 1
        %v608 = vsel %vm596, %v606, %v607
        %v609 = vrot.slane %v311, 1
        %v610 = vrot.slane %v359, 1
        %v611 = vsel %vm596, %v609, %v610
        %v612 = vrot.slane %v312, 1
        %v613 = vrot.slane %v360, 1
        %v614 = vsel %vm596, %v612, %v613
        %v615 = vrot.slane %v313, 1
        %v616 = vrot.slane %v361, 1
        %v617 = vsel %vm596, %v615, %v616
        %v618 = vrot.slane %v314, 1
        %v619 = vrot.slane %v362, 1
        %v620 = vsel %vm596, %v618, %v619
        %v621 = vrot.slane %v315, 1
        %v622 = vrot.slane %v363, 1
        %v623 = vsel %vm596, %v621, %v622
        %v624 = vrot.slane %v316, 1
        %v625 = vrot.slane %v364, 1
        %v626 = vsel %vm596, %v624, %v625
        %v627 = vrot.slane %v317, 1
        %v628 = vrot.slane %v365, 1
        %v629 = vsel %vm596, %v627, %v628
        %v630 = vrot.slane %v318, 1
        %v631 = vrot.slane %v366, 1
        %v632 = vsel %vm596, %v630, %v631
        %v633 = vrot.slane %v319, 1
        %v634 = vrot.slane %v367, 1
        %v635 = vsel %vm596, %v633, %v634
        %v636 = vrot.slane %v320, 1
        %v637 = vrot.slane %v368, 1
        %v638 = vsel %vm596, %v636, %v637
        %v639 = vrot.slane %v321, 1
        %v640 = vrot.slane %v369, 1
        %v641 = vsel %vm596, %v639, %v640
        %v642 = vrot.slane %v322, 1
        %v643 = vrot.slane %v370, 1
        %v644 = vsel %vm596, %v642, %v643
        %645 = vrot.lane.b32.xlu0 %v599, 16
        %v646 = vpop.permute.xlu0 %645
        %647 = vrot.lane.b32.xlu0 %v602, 16
        %v648 = vpop.permute.xlu0 %647
        %649 = vrot.lane.b32.xlu0 %v605, 16
        %v650 = vpop.permute.xlu0 %649
        %651 = vrot.lane.b32.xlu0 %v608, 16
        %v652 = vpop.permute.xlu0 %651
        %653 = vrot.lane.b32.xlu0 %v611, 16
        %v654 = vpop.permute.xlu0 %653
        %655 = vrot.lane.b32.xlu0 %v614, 16
        %v656 = vpop.permute.xlu0 %655
        %657 = vrot.lane.b32.xlu0 %v617, 16
        %v658 = vpop.permute.xlu0 %657
        %659 = vrot.lane.b32.xlu0 %v620, 16
        %v660 = vpop.permute.xlu0 %659
        %661 = vrot.lane.b32.xlu0 %v623, 16
        %v662 = vpop.permute.xlu0 %661
        %663 = vrot.lane.b32.xlu0 %v626, 16
        %v664 = vpop.permute.xlu0 %663
        %665 = vrot.lane.b32.xlu0 %v629, 16
        %v666 = vpop.permute.xlu0 %665
        %667 = vrot.lane.b32.xlu0 %v632, 16
        %v668 = vpop.permute.xlu0 %667
        %669 = vrot.lane.b32.xlu0 %v635, 16
        %v670 = vpop.permute.xlu0 %669
        %671 = vrot.lane.b32.xlu0 %v638, 16
        %v672 = vpop.permute.xlu0 %671
        %673 = vrot.lane.b32.xlu0 %v641, 16
        %v674 = vpop.permute.xlu0 %673
        %675 = vrot.lane.b32.xlu0 %v644, 16
        %v676 = vpop.permute.xlu0 %675
        %v679 = vunpack.c.l.b16 %v237
        %v680 = vunpack.c.l.b16 %v238
        %v681 = vpack.c.b16 %v680, %v679
        %682 = vrot.lane.b32.xlu0 %v308, 24
        %v683 = vpop.permute.xlu0 %682
        %684 = vrot.lane.b32.xlu0 %v309, 24
        %v685 = vpop.permute.xlu0 %684
        %686 = vrot.lane.b32.xlu0 %v310, 24
        %v687 = vpop.permute.xlu0 %686
        %688 = vrot.lane.b32.xlu0 %v311, 24
        %v689 = vpop.permute.xlu0 %688
        %690 = vrot.lane.b32.xlu0 %v312, 24
        %v691 = vpop.permute.xlu0 %690
        %692 = vrot.lane.b32.xlu0 %v313, 24
        %v693 = vpop.permute.xlu0 %692
        %694 = vrot.lane.b32.xlu0 %v314, 24
        %v695 = vpop.permute.xlu0 %694
        %696 = vrot.lane.b32.xlu0 %v315, 24
        %v697 = vpop.permute.xlu0 %696
        %698 = vrot.lane.b32.xlu0 %v316, 24
        %v699 = vpop.permute.xlu0 %698
        %700 = vrot.lane.b32.xlu0 %v317, 24
        %v701 = vpop.permute.xlu0 %700
        %702 = vrot.lane.b32.xlu0 %v318, 24
        %v703 = vpop.permute.xlu0 %702
        %704 = vrot.lane.b32.xlu0 %v319, 24
        %v705 = vpop.permute.xlu0 %704
        %706 = vrot.lane.b32.xlu0 %v320, 24
        %v707 = vpop.permute.xlu0 %706
        %708 = vrot.lane.b32.xlu0 %v321, 24
        %v709 = vpop.permute.xlu0 %708
        %710 = vrot.lane.b32.xlu0 %v322, 24
        %v711 = vpop.permute.xlu0 %710
        %712 = vrot.lane.b32.xlu0 %v681, 24
        %v713 = vpop.permute.xlu0 %712
        %v715 = vunpack.c.l.b16 %v239
        %v716 = vpack.c.b16 %v715, %v715
        %v718 = vshrl.u32 %v681, 16
        %v720 = vshll.u32 %v681, 16
        %v722 = vrot.slane %v720, 1
        %v723 = vor.u32 %v718, %v722
        %v725 = vshll.u32 %v716, 16
        %v727 = vrot.slane %v725, 1
        %v728 = vsel %vm371, %v723, %v727
        %729 = vrot.lane.b32.xlu0 %v395, 32
        %v730 = vpop.permute.xlu0 %729
        %731 = vrot.lane.b32.xlu0 %v407, 32
        %v732 = vpop.permute.xlu0 %731
        %733 = vrot.lane.b32.xlu0 %v419, 32
        %v734 = vpop.permute.xlu0 %733
        %735 = vrot.lane.b32.xlu0 %v431, 32
        %v736 = vpop.permute.xlu0 %735
        %737 = vrot.lane.b32.xlu0 %v443, 32
        %v738 = vpop.permute.xlu0 %737
        %739 = vrot.lane.b32.xlu0 %v455, 32
        %v740 = vpop.permute.xlu0 %739
        %741 = vrot.lane.b32.xlu0 %v467, 32
        %v742 = vpop.permute.xlu0 %741
        %743 = vrot.lane.b32.xlu0 %v479, 32
        %v744 = vpop.permute.xlu0 %743
        %745 = vrot.lane.b32.xlu0 %v491, 32
        %v746 = vpop.permute.xlu0 %745
        %747 = vrot.lane.b32.xlu0 %v503, 32
        %v748 = vpop.permute.xlu0 %747
        %749 = vrot.lane.b32.xlu0 %v515, 32
        %v750 = vpop.permute.xlu0 %749
        %751 = vrot.lane.b32.xlu0 %v527, 32
        %v752 = vpop.permute.xlu0 %751
        %753 = vrot.lane.b32.xlu0 %v539, 32
        %v754 = vpop.permute.xlu0 %753
        %755 = vrot.lane.b32.xlu0 %v551, 32
        %v756 = vpop.permute.xlu0 %755
        %757 = vrot.lane.b32.xlu0 %v563, 32
        %v758 = vpop.permute.xlu0 %757
        %759 = vrot.lane.b32.xlu0 %v728, 32
        %v760 = vpop.permute.xlu0 %759
        %v761 = vrot.slane %v681, 1
        %v762 = vrot.slane %v716, 1
        %v763 = vsel %vm596, %v761, %v762
        %764 = vrot.lane.b32.xlu0 %v602, 40
        %v765 = vpop.permute.xlu0 %764
        %766 = vrot.lane.b32.xlu0 %v605, 40
        %v767 = vpop.permute.xlu0 %766
        %768 = vrot.lane.b32.xlu0 %v608, 40
        %v769 = vpop.permute.xlu0 %768
        %770 = vrot.lane.b32.xlu0 %v611, 40
        %v771 = vpop.permute.xlu0 %770
        %772 = vrot.lane.b32.xlu0 %v614, 40
        %v773 = vpop.permute.xlu0 %772
        %774 = vrot.lane.b32.xlu0 %v617, 40
        %v775 = vpop.permute.xlu0 %774
        %776 = vrot.lane.b32.xlu0 %v620, 40
        %v777 = vpop.permute.xlu0 %776
        %778 = vrot.lane.b32.xlu0 %v623, 40
        %v779 = vpop.permute.xlu0 %778
        %780 = vrot.lane.b32.xlu0 %v626, 40
        %v781 = vpop.permute.xlu0 %780
        %782 = vrot.lane.b32.xlu0 %v629, 40
        %v783 = vpop.permute.xlu0 %782
        %784 = vrot.lane.b32.xlu0 %v632, 40
        %v785 = vpop.permute.xlu0 %784
        %786 = vrot.lane.b32.xlu0 %v635, 40
        %v787 = vpop.permute.xlu0 %786
        %788 = vrot.lane.b32.xlu0 %v638, 40
        %v789 = vpop.permute.xlu0 %788
        %790 = vrot.lane.b32.xlu0 %v641, 40
        %v791 = vpop.permute.xlu0 %790
        %792 = vrot.lane.b32.xlu0 %v644, 40
        %v793 = vpop.permute.xlu0 %792
        %794 = vrot.lane.b32.xlu0 %v763, 40
        %v795 = vpop.permute.xlu0 %794
        %v798 = vunpack.c.l.b16 %v240
        %v799 = vunpack.c.l.b16 %v241
        %v800 = vpack.c.b16 %v799, %v798
        %801 = vrot.lane.b32.xlu0 %v309, 48
        %v802 = vpop.permute.xlu0 %801
        %803 = vrot.lane.b32.xlu0 %v310, 48
        %v804 = vpop.permute.xlu0 %803
        %805 = vrot.lane.b32.xlu0 %v311, 48
        %v806 = vpop.permute.xlu0 %805
        %807 = vrot.lane.b32.xlu0 %v312, 48
        %v808 = vpop.permute.xlu0 %807
        %809 = vrot.lane.b32.xlu0 %v313, 48
        %v810 = vpop.permute.xlu0 %809
        %811 = vrot.lane.b32.xlu0 %v314, 48
        %v812 = vpop.permute.xlu0 %811
        %813 = vrot.lane.b32.xlu0 %v315, 48
        %v814 = vpop.permute.xlu0 %813
        %815 = vrot.lane.b32.xlu0 %v316, 48
        %v816 = vpop.permute.xlu0 %815
        %817 = vrot.lane.b32.xlu0 %v317, 48
        %v818 = vpop.permute.xlu0 %817
        %819 = vrot.lane.b32.xlu0 %v318, 48
        %v820 = vpop.permute.xlu0 %819
        %821 = vrot.lane.b32.xlu0 %v319, 48
        %v822 = vpop.permute.xlu0 %821
        %823 = vrot.lane.b32.xlu0 %v320, 48
        %v824 = vpop.permute.xlu0 %823
        %825 = vrot.lane.b32.xlu0 %v321, 48
        %v826 = vpop.permute.xlu0 %825
        %827 = vrot.lane.b32.xlu0 %v322, 48
        %v828 = vpop.permute.xlu0 %827
        %829 = vrot.lane.b32.xlu0 %v681, 48
        %v830 = vpop.permute.xlu0 %829
        %831 = vrot.lane.b32.xlu0 %v800, 48
        %v832 = vpop.permute.xlu0 %831
        %v834 = vunpack.c.l.b16 %v242
        %v835 = vpack.c.b16 %v834, %v834
        %v837 = vshrl.u32 %v800, 16
        %v839 = vshll.u32 %v800, 16
        %v841 = vrot.slane %v839, 1
        %v842 = vor.u32 %v837, %v841
        %v844 = vshll.u32 %v835, 16
        %v846 = vrot.slane %v844, 1
        %v847 = vsel %vm371, %v842, %v846
        %848 = vrot.lane.b32.xlu0 %v407, 56
        %v849 = vpop.permute.xlu0 %848
        %850 = vrot.lane.b32.xlu0 %v419, 56
        %v851 = vpop.permute.xlu0 %850
        %852 = vrot.lane.b32.xlu0 %v431, 56
        %v853 = vpop.permute.xlu0 %852
        %854 = vrot.lane.b32.xlu0 %v443, 56
        %v855 = vpop.permute.xlu0 %854
        %856 = vrot.lane.b32.xlu0 %v455, 56
        %v857 = vpop.permute.xlu0 %856
        %858 = vrot.lane.b32.xlu0 %v467, 56
        %v859 = vpop.permute.xlu0 %858
        %860 = vrot.lane.b32.xlu0 %v479, 56
        %v861 = vpop.permute.xlu0 %860
        %862 = vrot.lane.b32.xlu0 %v491, 56
        %v863 = vpop.permute.xlu0 %862
        %864 = vrot.lane.b32.xlu0 %v503, 56
        %v865 = vpop.permute.xlu0 %864
        %866 = vrot.lane.b32.xlu0 %v515, 56
        %v867 = vpop.permute.xlu0 %866
        %868 = vrot.lane.b32.xlu0 %v527, 56
        %v869 = vpop.permute.xlu0 %868
        %870 = vrot.lane.b32.xlu0 %v539, 56
        %v871 = vpop.permute.xlu0 %870
        %872 = vrot.lane.b32.xlu0 %v551, 56
        %v873 = vpop.permute.xlu0 %872
        %874 = vrot.lane.b32.xlu0 %v563, 56
        %v875 = vpop.permute.xlu0 %874
        %876 = vrot.lane.b32.xlu0 %v728, 56
        %v877 = vpop.permute.xlu0 %876
        %878 = vrot.lane.b32.xlu0 %v847, 56
        %v879 = vpop.permute.xlu0 %878
        %v880 = vrot.slane %v800, 1
        %v881 = vrot.slane %v835, 1
        %v882 = vsel %vm596, %v880, %v881
        %883 = vrot.lane.b32.xlu0 %v605, 64
        %v884 = vpop.permute.xlu0 %883
        %885 = vrot.lane.b32.xlu0 %v608, 64
        %v886 = vpop.permute.xlu0 %885
        %887 = vrot.lane.b32.xlu0 %v611, 64
        %v888 = vpop.permute.xlu0 %887
        %889 = vrot.lane.b32.xlu0 %v614, 64
        %v890 = vpop.permute.xlu0 %889
        %891 = vrot.lane.b32.xlu0 %v617, 64
        %v892 = vpop.permute.xlu0 %891
        %893 = vrot.lane.b32.xlu0 %v620, 64
        %v894 = vpop.permute.xlu0 %893
        %895 = vrot.lane.b32.xlu0 %v623, 64
        %v896 = vpop.permute.xlu0 %895
        %897 = vrot.lane.b32.xlu0 %v626, 64
        %v898 = vpop.permute.xlu0 %897
        %899 = vrot.lane.b32.xlu0 %v629, 64
        %v900 = vpop.permute.xlu0 %899
        %901 = vrot.lane.b32.xlu0 %v632, 64
        %v902 = vpop.permute.xlu0 %901
        %903 = vrot.lane.b32.xlu0 %v635, 64
        %v904 = vpop.permute.xlu0 %903
        %905 = vrot.lane.b32.xlu0 %v638, 64
        %v906 = vpop.permute.xlu0 %905
        %907 = vrot.lane.b32.xlu0 %v641, 64
        %v908 = vpop.permute.xlu0 %907
        %909 = vrot.lane.b32.xlu0 %v644, 64
        %v910 = vpop.permute.xlu0 %909
        %911 = vrot.lane.b32.xlu0 %v763, 64
        %v912 = vpop.permute.xlu0 %911
        %913 = vrot.lane.b32.xlu0 %v882, 64
        %v914 = vpop.permute.xlu0 %913
        %vm915 = vcmask 64512
        %v917 = vsel %vm915, %v307, %v565
        %v919 = vsel %vm915, %v308, %v567
        %v921 = vsel %vm915, %v309, %v569
        %v923 = vsel %vm915, %v310, %v571
        %v925 = vsel %vm915, %v311, %v573
        %v927 = vsel %vm915, %v312, %v575
        %v929 = vsel %vm915, %v313, %v577
        %v931 = vsel %vm915, %v314, %v579
        %v933 = vsel %vm915, %v315, %v581
        %v935 = vsel %vm915, %v316, %v583
        %v937 = vsel %vm915, %v317, %v585
        %v939 = vsel %vm915, %v318, %v587
        %v941 = vsel %vm915, %v319, %v589
        %v943 = vsel %vm915, %v320, %v591
        %v945 = vsel %vm915, %v321, %v593
        %v947 = vsel %vm915, %v322, %v595
        %vm948 = vcmask 130048
        %v950 = vsel %vm948, %v917, %v646
        %v952 = vsel %vm948, %v919, %v648
        %v954 = vsel %vm948, %v921, %v650
        %v956 = vsel %vm948, %v923, %v652
        %v958 = vsel %vm948, %v925, %v654
        %v960 = vsel %vm948, %v927, %v656
        %v962 = vsel %vm948, %v929, %v658
        %v964 = vsel %vm948, %v931, %v660
        %v966 = vsel %vm948, %v933, %v662
        %v968 = vsel %vm948, %v935, %v664
        %v970 = vsel %vm948, %v937, %v666
        %v972 = vsel %vm948, %v939, %v668
        %v974 = vsel %vm948, %v941, %v670
        %v976 = vsel %vm948, %v943, %v672
        %v978 = vsel %vm948, %v945, %v674
        %v980 = vsel %vm948, %v947, %v676
        %vm981 = vcmask 195584
        %v983 = vsel %vm981, %v950, %v683
        %v985 = vsel %vm981, %v952, %v685
        %v987 = vsel %vm981, %v954, %v687
        %v989 = vsel %vm981, %v956, %v689
        %v991 = vsel %vm981, %v958, %v691
        %v993 = vsel %vm981, %v960, %v693
        %v995 = vsel %vm981, %v962, %v695
        %v997 = vsel %vm981, %v964, %v697
        %v999 = vsel %vm981, %v966, %v699
        %v1001 = vsel %vm981, %v968, %v701
        %v1003 = vsel %vm981, %v970, %v703
        %v1005 = vsel %vm981, %v972, %v705
        %v1007 = vsel %vm981, %v974, %v707
        %v1009 = vsel %vm981, %v976, %v709
        %v1011 = vsel %vm981, %v978, %v711
        %v1013 = vsel %vm981, %v980, %v713
        %vm1014 = vcmask 261120
        %v1016 = vsel %vm1014, %v983, %v730
        %v1018 = vsel %vm1014, %v985, %v732
        %v1020 = vsel %vm1014, %v987, %v734
        %v1022 = vsel %vm1014, %v989, %v736
        %v1024 = vsel %vm1014, %v991, %v738
        %v1026 = vsel %vm1014, %v993, %v740
        %v1028 = vsel %vm1014, %v995, %v742
        %v1030 = vsel %vm1014, %v997, %v744
        %v1032 = vsel %vm1014, %v999, %v746
        %v1034 = vsel %vm1014, %v1001, %v748
        %v1036 = vsel %vm1014, %v1003, %v750
        %v1038 = vsel %vm1014, %v1005, %v752
        %v1040 = vsel %vm1014, %v1007, %v754
        %v1042 = vsel %vm1014, %v1009, %v756
        %v1044 = vsel %vm1014, %v1011, %v758
        %v1046 = vsel %vm1014, %v1013, %v760
        %vm1047 = vcmask 326656
        %v1049 = vsel %vm1047, %v1016, %v765
        %v1051 = vsel %vm1047, %v1018, %v767
        %v1053 = vsel %vm1047, %v1020, %v769
        %v1055 = vsel %vm1047, %v1022, %v771
        %v1057 = vsel %vm1047, %v1024, %v773
        %v1059 = vsel %vm1047, %v1026, %v775
        %v1061 = vsel %vm1047, %v1028, %v777
        %v1063 = vsel %vm1047, %v1030, %v779
        %v1065 = vsel %vm1047, %v1032, %v781
        %v1067 = vsel %vm1047, %v1034, %v783
        %v1069 = vsel %vm1047, %v1036, %v785
        %v1071 = vsel %vm1047, %v1038, %v787
        %v1073 = vsel %vm1047, %v1040, %v789
        %v1075 = vsel %vm1047, %v1042, %v791
        %v1077 = vsel %vm1047, %v1044, %v793
        %v1079 = vsel %vm1047, %v1046, %v795
        %vm1080 = vcmask 392192
        %v1082 = vsel %vm1080, %v1049, %v802
        %v1084 = vsel %vm1080, %v1051, %v804
        %v1086 = vsel %vm1080, %v1053, %v806
        %v1088 = vsel %vm1080, %v1055, %v808
        %v1090 = vsel %vm1080, %v1057, %v810
        %v1092 = vsel %vm1080, %v1059, %v812
        %v1094 = vsel %vm1080, %v1061, %v814
        %v1096 = vsel %vm1080, %v1063, %v816
        %v1098 = vsel %vm1080, %v1065, %v818
        %v1100 = vsel %vm1080, %v1067, %v820
        %v1102 = vsel %vm1080, %v1069, %v822
        %v1104 = vsel %vm1080, %v1071, %v824
        %v1106 = vsel %vm1080, %v1073, %v826
        %v1108 = vsel %vm1080, %v1075, %v828
        %v1110 = vsel %vm1080, %v1077, %v830
        %v1112 = vsel %vm1080, %v1079, %v832
        %vm1113 = vcmask 457728
        %v1115 = vsel %vm1113, %v1082, %v849
        %v1117 = vsel %vm1113, %v1084, %v851
        %v1119 = vsel %vm1113, %v1086, %v853
        %v1121 = vsel %vm1113, %v1088, %v855
        %v1123 = vsel %vm1113, %v1090, %v857
        %v1125 = vsel %vm1113, %v1092, %v859
        %v1127 = vsel %vm1113, %v1094, %v861
        %v1129 = vsel %vm1113, %v1096, %v863
        %v1131 = vsel %vm1113, %v1098, %v865
        %v1133 = vsel %vm1113, %v1100, %v867
        %v1135 = vsel %vm1113, %v1102, %v869
        %v1137 = vsel %vm1113, %v1104, %v871
        %v1139 = vsel %vm1113, %v1106, %v873
        %v1141 = vsel %vm1113, %v1108, %v875
        %v1143 = vsel %vm1113, %v1110, %v877
        %v1145 = vsel %vm1113, %v1112, %v879
        %vm1146 = vcmask 523264
        %v1148 = vsel %vm1146, %v1115, %v884
        %v1150 = vsel %vm1146, %v1117, %v886
        %v1152 = vsel %vm1146, %v1119, %v888
        %v1154 = vsel %vm1146, %v1121, %v890
        %v1156 = vsel %vm1146, %v1123, %v892
        %v1158 = vsel %vm1146, %v1125, %v894
        %v1160 = vsel %vm1146, %v1127, %v896
        %v1162 = vsel %vm1146, %v1129, %v898
        %v1164 = vsel %vm1146, %v1131, %v900
        %v1166 = vsel %vm1146, %v1133, %v902
        %v1168 = vsel %vm1146, %v1135, %v904
        %v1170 = vsel %vm1146, %v1137, %v906
        %v1172 = vsel %vm1146, %v1139, %v908
        %v1174 = vsel %vm1146, %v1141, %v910
        %v1176 = vsel %vm1146, %v1143, %v912
        %v1178 = vsel %vm1146, %v1145, %v914
        %vm1179 = vcmask 588800
        %v1181 = vsel %vm1179, %v1148, 0
        %v1183 = vsel %vm1179, %v1150, 0
        %v1185 = vsel %vm1179, %v1152, 0
        %v1187 = vsel %vm1179, %v1154, 0
        %v1189 = vsel %vm1179, %v1156, 0
        %v1191 = vsel %vm1179, %v1158, 0
        %v1193 = vsel %vm1179, %v1160, 0
        %v1195 = vsel %vm1179, %v1162, 0
        %v1197 = vsel %vm1179, %v1164, 0
        %v1199 = vsel %vm1179, %v1166, 0
        %v1201 = vsel %vm1179, %v1168, 0
        %v1203 = vsel %vm1179, %v1170, 0
        %v1205 = vsel %vm1179, %v1172, 0
        %v1207 = vsel %vm1179, %v1174, 0
        %v1209 = vsel %vm1179, %v1176, 0
        %v1211 = vsel %vm1179, %v1178, 0
        %v1213 = vld [vmem:[%s1] sm:$0xf]
        %v1214 = vld [vmem:[%s1 + $0x4] sm:$0xf]
        %v1215 = vld [vmem:[%s1 + $0x8] sm:$0xf]
        %v1216 = vld [vmem:[%s1 + $0xc] sm:$0xf]
        %v1217 = vld [vmem:[%s1 + $0x10] sm:$0xf]
        %v1218 = vld [vmem:[%s1 + $0x14] sm:$0xf]
        %v1219 = vld [vmem:[%s1 + $0x18] sm:$0xf]
        %v1220 = vld [vmem:[%s1 + $0x1c] sm:$0xf]
        %v1221 = vld [vmem:[%s1 + $0x20] sm:$0xf]
        %v1222 = vld [vmem:[%s1 + $0x24] sm:$0xf]
        %v1223 = vld [vmem:[%s1 + $0x28] sm:$0xf]
        %v1224 = vld [vmem:[%s1 + $0x2c] sm:$0xf]
        %v1225 = vld [vmem:[%s1 + $0x30] sm:$0xf]
        %v1226 = vld [vmem:[%s1 + $0x34] sm:$0xf]
        %v1227 = vld [vmem:[%s1 + $0x38] sm:$0xf]
        %v1228 = vld [vmem:[%s1 + $0x3c] sm:$0xf]
        %v1229 = vld [vmem:[%s2] sm:$0x1]
        %v1231 = vlaneseq
        %v1232 = vshrl.u32 %v1231, 7
        %v1233 = vsub.s32 0, %v1232
        %v1234 = vrot.slane %v1229, %v1233
        %v1252 = vunpack.c.l.b16 %v1213
        %v1253 = vunpack.c.l.b16 %v1214
        %v1254 = vunpack.c.l.b16 %v1215
        %v1255 = vunpack.c.l.b16 %v1216
        %v1256 = vunpack.c.l.b16 %v1217
        %v1257 = vunpack.c.l.b16 %v1218
        %v1258 = vunpack.c.l.b16 %v1219
        %v1259 = vunpack.c.l.b16 %v1220
        %v1260 = vunpack.c.l.b16 %v1221
        %v1261 = vunpack.c.l.b16 %v1222
        %v1262 = vunpack.c.l.b16 %v1223
        %v1263 = vunpack.c.l.b16 %v1224
        %v1264 = vunpack.c.l.b16 %v1225
        %v1265 = vunpack.c.l.b16 %v1226
        %v1266 = vunpack.c.l.b16 %v1227
        %v1267 = vunpack.c.l.b16 %v1228
        %v1268 = vpack.c.b16 %v1253, %v1252
        %v1269 = vpack.c.b16 %v1255, %v1254
        %v1270 = vpack.c.b16 %v1257, %v1256
        %v1271 = vpack.c.b16 %v1259, %v1258
        %v1272 = vpack.c.b16 %v1261, %v1260
        %v1273 = vpack.c.b16 %v1263, %v1262
        %v1274 = vpack.c.b16 %v1265, %v1264
        %v1275 = vpack.c.b16 %v1267, %v1266
        %1284 = vmatprep.subr.bf16.mxu0 0
        %1285 = vmatpush1.bf16.msra.mxu0 %v1275
        %1286 = vmatprep.subr.bf16.mxu0 0
        %1287 = vmatpush1.bf16.msra.mxu0 %v1274
        %1288 = vmatprep.subr.bf16.mxu0 0
        %1289 = vmatpush1.bf16.msra.mxu0 %v1273
        %1290 = vmatprep.subr.bf16.mxu0 0
        %1291 = vmatpush1.bf16.msra.mxu0 %v1272
        %1292 = vmatprep.subr.bf16.mxu0 0
        %1293 = vmatpush1.bf16.msra.mxu0 %v1271
        %1294 = vmatprep.subr.bf16.mxu0 0
        %1295 = vmatpush1.bf16.msra.mxu0 %v1270
        %1296 = vmatprep.subr.bf16.mxu0 0
        %1297 = vmatpush1.bf16.msra.mxu0 %v1269
        %1298 = vmatprep.subr.bf16.mxu0 0
        %1299 = vmatpush1.bf16.msra.mxu0 %v1268
        %1300 = vmatprep.subr.bf16.mxu0 0
        %1301 = vmatpush2.bf16.msra.mxu0 0
        %1302 = vmatprep.subr.bf16.mxu0 0
        %1303 = vmatpush2.bf16.msra.mxu0 0
        %1304 = vmatprep.subr.bf16.mxu0 0
        %1305 = vmatpush2.bf16.msra.mxu0 0
        %1306 = vmatprep.subr.bf16.mxu0 0
        %1307 = vmatpush2.bf16.msra.mxu0 0
        %1308 = vmatprep.subr.bf16.mxu0 0
        %1309 = vmatpush2.bf16.msra.mxu0 0
        %1310 = vmatprep.subr.bf16.mxu0 0
        %1311 = vmatpush2.bf16.msra.mxu0 0
        %1312 = vmatprep.subr.bf16.mxu0 0
        %1313 = vmatpush2.bf16.msra.mxu0 0
        %1314 = vmatprep.subr.bf16.mxu0 0
        %1315 = vmatpush2.bf16.msra.mxu0 0
        %1316 = vmatprep.mubr.bf16.mxu0 0
        %1317 = vmatmul.mubr.bf16.gmra.mxu0 %v1181
        %v1318 = vpop.f32.mrf.mxu0
        %v1319 = vadd.f32 %v1234, %v1318
        %v1320 = vpop.f32.mrf.mxu0
        %v1321 = vpop.f32.mrf.mxu0
        %v1322 = vadd.f32 %v1234, %v1321
        %v1323 = vpop.f32.mrf.mxu0
        %1324 = vmatprep.mubr.bf16.mxu0 0
        %1325 = vmatmul.mubr.bf16.gmra.mxu0 %v1183
        %v1326 = vpop.f32.mrf.mxu0
        %v1327 = vadd.f32 %v1234, %v1326
        %v1328 = vpop.f32.mrf.mxu0
        %v1329 = vpop.f32.mrf.mxu0
        %v1330 = vadd.f32 %v1234, %v1329
        %v1331 = vpop.f32.mrf.mxu0
        %1332 = vmatprep.mubr.bf16.mxu0 0
        %1333 = vmatmul.mubr.bf16.gmra.mxu0 %v1185
        %v1334 = vpop.f32.mrf.mxu0
        %v1335 = vadd.f32 %v1234, %v1334
        %v1336 = vpop.f32.mrf.mxu0
        %v1337 = vpop.f32.mrf.mxu0
        %v1338 = vadd.f32 %v1234, %v1337
        %v1339 = vpop.f32.mrf.mxu0
        %1340 = vmatprep.mubr.bf16.mxu0 0
        %1341 = vmatmul.mubr.bf16.gmra.mxu0 %v1187
        %v1342 = vpop.f32.mrf.mxu0
        %v1343 = vadd.f32 %v1234, %v1342
        %v1344 = vpop.f32.mrf.mxu0
        %v1345 = vpop.f32.mrf.mxu0
        %v1346 = vadd.f32 %v1234, %v1345
        %v1347 = vpop.f32.mrf.mxu0
        %1348 = vmatprep.mubr.bf16.mxu0 0
        %1349 = vmatmul.mubr.bf16.gmra.mxu0 %v1189
        %v1350 = vpop.f32.mrf.mxu0
        %v1351 = vadd.f32 %v1234, %v1350
        %v1352 = vpop.f32.mrf.mxu0
        %v1353 = vpop.f32.mrf.mxu0
        %v1354 = vadd.f32 %v1234, %v1353
        %v1355 = vpop.f32.mrf.mxu0
        %1356 = vmatprep.mubr.bf16.mxu0 0
        %1357 = vmatmul.mubr.bf16.gmra.mxu0 %v1191
        %v1358 = vpop.f32.mrf.mxu0
        %v1359 = vadd.f32 %v1234, %v1358
        %v1360 = vpop.f32.mrf.mxu0
        %v1361 = vpop.f32.mrf.mxu0
        %v1362 = vadd.f32 %v1234, %v1361
        %v1363 = vpop.f32.mrf.mxu0
        %1364 = vmatprep.mubr.bf16.mxu0 0
        %1365 = vmatmul.mubr.bf16.gmra.mxu0 %v1193
        %v1366 = vpop.f32.mrf.mxu0
        %v1367 = vadd.f32 %v1234, %v1366
        %v1368 = vpop.f32.mrf.mxu0
        %v1369 = vpop.f32.mrf.mxu0
        %v1370 = vadd.f32 %v1234, %v1369
        %v1371 = vpop.f32.mrf.mxu0
        %1372 = vmatprep.mubr.bf16.mxu0 0
        %1373 = vmatmul.mubr.bf16.gmra.mxu0 %v1195
        %v1374 = vpop.f32.mrf.mxu0
        %v1375 = vadd.f32 %v1234, %v1374
        %v1376 = vpop.f32.mrf.mxu0
        %v1377 = vpop.f32.mrf.mxu0
        %v1378 = vadd.f32 %v1234, %v1377
        %v1379 = vpop.f32.mrf.mxu0
        %1380 = vmatprep.mubr.bf16.mxu0 0
        %1381 = vmatmul.mubr.bf16.gmra.mxu0 %v1197
        %v1382 = vpop.f32.mrf.mxu0
        %v1383 = vadd.f32 %v1234, %v1382
        %v1384 = vpop.f32.mrf.mxu0
        %v1385 = vpop.f32.mrf.mxu0
        %v1386 = vadd.f32 %v1234, %v1385
        %v1387 = vpop.f32.mrf.mxu0
        %1388 = vmatprep.mubr.bf16.mxu0 0
        %1389 = vmatmul.mubr.bf16.gmra.mxu0 %v1199
        %v1390 = vpop.f32.mrf.mxu0
        %v1391 = vadd.f32 %v1234, %v1390
        %v1392 = vpop.f32.mrf.mxu0
        %v1393 = vpop.f32.mrf.mxu0
        %v1394 = vadd.f32 %v1234, %v1393
        %v1395 = vpop.f32.mrf.mxu0
        %1396 = vmatprep.mubr.bf16.mxu0 0
        %1397 = vmatmul.mubr.bf16.gmra.mxu0 %v1201
        %v1398 = vpop.f32.mrf.mxu0
        %v1399 = vadd.f32 %v1234, %v1398
        %v1400 = vpop.f32.mrf.mxu0
        %v1401 = vpop.f32.mrf.mxu0
        %v1402 = vadd.f32 %v1234, %v1401
        %v1403 = vpop.f32.mrf.mxu0
        %1404 = vmatprep.mubr.bf16.mxu0 0
        %1405 = vmatmul.mubr.bf16.gmra.mxu0 %v1203
        %v1406 = vpop.f32.mrf.mxu0
        %v1407 = vadd.f32 %v1234, %v1406
        %v1408 = vpop.f32.mrf.mxu0
        %v1409 = vpop.f32.mrf.mxu0
        %v1410 = vadd.f32 %v1234, %v1409
        %v1411 = vpop.f32.mrf.mxu0
        %1412 = vmatprep.mubr.bf16.mxu0 0
        %1413 = vmatmul.mubr.bf16.gmra.mxu0 %v1205
        %v1414 = vpop.f32.mrf.mxu0
        %v1415 = vadd.f32 %v1234, %v1414
        %v1416 = vpop.f32.mrf.mxu0
        %v1417 = vpop.f32.mrf.mxu0
        %v1418 = vadd.f32 %v1234, %v1417
        %v1419 = vpop.f32.mrf.mxu0
        %1420 = vmatprep.mubr.bf16.mxu0 0
        %1421 = vmatmul.mubr.bf16.gmra.mxu0 %v1207
        %v1422 = vpop.f32.mrf.mxu0
        %v1423 = vadd.f32 %v1234, %v1422
        %v1424 = vpop.f32.mrf.mxu0
        %v1425 = vpop.f32.mrf.mxu0
        %v1426 = vadd.f32 %v1234, %v1425
        %v1427 = vpop.f32.mrf.mxu0
        %1428 = vmatprep.mubr.bf16.mxu0 0
        %1429 = vmatmul.mubr.bf16.gmra.mxu0 %v1209
        %v1430 = vpop.f32.mrf.mxu0
        %v1431 = vadd.f32 %v1234, %v1430
        %v1432 = vpop.f32.mrf.mxu0
        %v1433 = vpop.f32.mrf.mxu0
        %v1434 = vadd.f32 %v1234, %v1433
        %v1435 = vpop.f32.mrf.mxu0
        %1436 = vmatprep.mubr.bf16.mxu0 0
        %1437 = vmatmul.mubr.bf16.gmra.mxu0 %v1211
        %v1438 = vpop.f32.mrf.mxu0
        %v1439 = vadd.f32 %v1234, %v1438
        %v1440 = vpop.f32.mrf.mxu0
        %v1441 = vpop.f32.mrf.mxu0
        %v1442 = vadd.f32 %v1234, %v1441
        %v1443 = vpop.f32.mrf.mxu0
        %1444 = vdwg.mxu0
        %vm1445 = vcmp.ge.f32.partialorder %v1319, 0.0
        %vm1446 = vcmp.ge.f32.partialorder %v1322, 0.0
        %vm1447 = vcmp.ge.f32.partialorder %v1327, 0.0
        %vm1448 = vcmp.ge.f32.partialorder %v1330, 0.0
        %vm1449 = vcmp.ge.f32.partialorder %v1335, 0.0
        %vm1450 = vcmp.ge.f32.partialorder %v1338, 0.0
        %vm1451 = vcmp.ge.f32.partialorder %v1343, 0.0
        %vm1452 = vcmp.ge.f32.partialorder %v1346, 0.0
        %vm1453 = vcmp.ge.f32.partialorder %v1351, 0.0
        %vm1454 = vcmp.ge.f32.partialorder %v1354, 0.0
        %vm1455 = vcmp.ge.f32.partialorder %v1359, 0.0
        %vm1456 = vcmp.ge.f32.partialorder %v1362, 0.0
        %vm1457 = vcmp.ge.f32.partialorder %v1367, 0.0
        %vm1458 = vcmp.ge.f32.partialorder %v1370, 0.0
        %vm1459 = vcmp.ge.f32.partialorder %v1375, 0.0
        %vm1460 = vcmp.ge.f32.partialorder %v1378, 0.0
        %vm1461 = vcmp.ge.f32.partialorder %v1383, 0.0
        %vm1462 = vcmp.ge.f32.partialorder %v1386, 0.0
        %vm1463 = vcmp.ge.f32.partialorder %v1391, 0.0
        %vm1464 = vcmp.ge.f32.partialorder %v1394, 0.0
        %vm1465 = vcmp.ge.f32.partialorder %v1399, 0.0
        %vm1466 = vcmp.ge.f32.partialorder %v1402, 0.0
        %vm1467 = vcmp.ge.f32.partialorder %v1407, 0.0
        %vm1468 = vcmp.ge.f32.partialorder %v1410, 0.0
        %vm1469 = vcmp.ge.f32.partialorder %v1415, 0.0
        %vm1470 = vcmp.ge.f32.partialorder %v1418, 0.0
        %vm1471 = vcmp.ge.f32.partialorder %v1423, 0.0
        %vm1472 = vcmp.ge.f32.partialorder %v1426, 0.0
        %vm1473 = vcmp.ge.f32.partialorder %v1431, 0.0
        %vm1474 = vcmp.ge.f32.partialorder %v1434, 0.0
        %vm1475 = vcmp.ge.f32.partialorder %v1439, 0.0
        %vm1476 = vcmp.ge.f32.partialorder %v1442, 0.0
        %v1477 = vmul.f32 %v1319, 0.2
        %v1478 = vmul.f32 %v1322, 0.2
        %v1479 = vmul.f32 %v1327, 0.2
        %v1480 = vmul.f32 %v1330, 0.2
        %v1481 = vmul.f32 %v1335, 0.2
        %v1482 = vmul.f32 %v1338, 0.2
        %v1483 = vmul.f32 %v1343, 0.2
        %v1484 = vmul.f32 %v1346, 0.2
        %v1485 = vmul.f32 %v1351, 0.2
        %v1486 = vmul.f32 %v1354, 0.2
        %v1487 = vmul.f32 %v1359, 0.2
        %v1488 = vmul.f32 %v1362, 0.2
        %v1489 = vmul.f32 %v1367, 0.2
        %v1490 = vmul.f32 %v1370, 0.2
        %v1491 = vmul.f32 %v1375, 0.2
        %v1492 = vmul.f32 %v1378, 0.2
        %v1493 = vmul.f32 %v1383, 0.2
        %v1494 = vmul.f32 %v1386, 0.2
        %v1495 = vmul.f32 %v1391, 0.2
        %v1496 = vmul.f32 %v1394, 0.2
        %v1497 = vmul.f32 %v1399, 0.2
        %v1498 = vmul.f32 %v1402, 0.2
        %v1499 = vmul.f32 %v1407, 0.2
        %v1500 = vmul.f32 %v1410, 0.2
        %v1501 = vmul.f32 %v1415, 0.2
        %v1502 = vmul.f32 %v1418, 0.2
        %v1503 = vmul.f32 %v1423, 0.2
        %v1504 = vmul.f32 %v1426, 0.2
        %v1505 = vmul.f32 %v1431, 0.2
        %v1506 = vmul.f32 %v1434, 0.2
        %v1507 = vmul.f32 %v1439, 0.2
        %v1508 = vmul.f32 %v1442, 0.2
        %v1509 = vsel %vm1445, %v1319, %v1477
        %v1510 = vsel %vm1446, %v1322, %v1478
        %v1511 = vsel %vm1447, %v1327, %v1479
        %v1512 = vsel %vm1448, %v1330, %v1480
        %v1513 = vsel %vm1449, %v1335, %v1481
        %v1514 = vsel %vm1450, %v1338, %v1482
        %v1515 = vsel %vm1451, %v1343, %v1483
        %v1516 = vsel %vm1452, %v1346, %v1484
        %v1517 = vsel %vm1453, %v1351, %v1485
        %v1518 = vsel %vm1454, %v1354, %v1486
        %v1519 = vsel %vm1455, %v1359, %v1487
        %v1520 = vsel %vm1456, %v1362, %v1488
        %v1521 = vsel %vm1457, %v1367, %v1489
        %v1522 = vsel %vm1458, %v1370, %v1490
        %v1523 = vsel %vm1459, %v1375, %v1491
        %v1524 = vsel %vm1460, %v1378, %v1492
        %v1525 = vsel %vm1461, %v1383, %v1493
        %v1526 = vsel %vm1462, %v1386, %v1494
        %v1527 = vsel %vm1463, %v1391, %v1495
        %v1528 = vsel %vm1464, %v1394, %v1496
        %v1529 = vsel %vm1465, %v1399, %v1497
        %v1530 = vsel %vm1466, %v1402, %v1498
        %v1531 = vsel %vm1467, %v1407, %v1499
        %v1532 = vsel %vm1468, %v1410, %v1500
        %v1533 = vsel %vm1469, %v1415, %v1501
        %v1534 = vsel %vm1470, %v1418, %v1502
        %v1535 = vsel %vm1471, %v1423, %v1503
        %v1536 = vsel %vm1472, %v1426, %v1504
        %v1537 = vsel %vm1473, %v1431, %v1505
        %v1538 = vsel %vm1474, %v1434, %v1506
        %v1539 = vsel %vm1475, %v1439, %v1507
        %v1540 = vsel %vm1476, %v1442, %v1508
        %v1541 = vpack.c.bf16 %v1510, %v1509
        %v1542 = vpack.c.bf16 %v1512, %v1511
        %v1543 = vpack.c.bf16 %v1514, %v1513
        %v1544 = vpack.c.bf16 %v1516, %v1515
        %v1545 = vpack.c.bf16 %v1518, %v1517
        %v1546 = vpack.c.bf16 %v1520, %v1519
        %v1547 = vpack.c.bf16 %v1522, %v1521
        %v1548 = vpack.c.bf16 %v1524, %v1523
        %v1549 = vpack.c.bf16 %v1526, %v1525
        %v1550 = vpack.c.bf16 %v1528, %v1527
        %v1551 = vpack.c.bf16 %v1530, %v1529
        %v1552 = vpack.c.bf16 %v1532, %v1531
        %v1553 = vpack.c.bf16 %v1534, %v1533
        %v1554 = vpack.c.bf16 %v1536, %v1535
        %v1555 = vpack.c.bf16 %v1538, %v1537
        %v1556 = vpack.c.bf16 %v1540, %v1539
        %v1573 = vunpack.c.l.b16 %v1541
        %v1574 = vunpack.c.h.b16 %v1541
        %v1575 = vunpack.c.l.b16 %v1542
        %v1576 = vunpack.c.h.b16 %v1542
        %v1577 = vunpack.c.l.b16 %v1543
        %v1578 = vunpack.c.h.b16 %v1543
        %v1579 = vunpack.c.l.b16 %v1544
        %v1580 = vunpack.c.h.b16 %v1544
        %v1581 = vunpack.c.l.b16 %v1545
        %v1582 = vunpack.c.h.b16 %v1545
        %v1583 = vunpack.c.l.b16 %v1546
        %v1584 = vunpack.c.h.b16 %v1546
        %v1585 = vunpack.c.l.b16 %v1547
        %v1586 = vunpack.c.h.b16 %v1547
        %v1587 = vunpack.c.l.b16 %v1548
        %v1588 = vunpack.c.h.b16 %v1548
        %v1589 = vunpack.c.l.b16 %v1549
        %v1590 = vunpack.c.h.b16 %v1549
        %v1591 = vunpack.c.l.b16 %v1550
        %v1592 = vunpack.c.h.b16 %v1550
        %v1593 = vunpack.c.l.b16 %v1551
        %v1594 = vunpack.c.h.b16 %v1551
        %v1595 = vunpack.c.l.b16 %v1552
        %v1596 = vunpack.c.h.b16 %v1552
        %v1597 = vunpack.c.l.b16 %v1553
        %v1598 = vunpack.c.h.b16 %v1553
        %v1599 = vunpack.c.l.b16 %v1554
        %v1600 = vunpack.c.h.b16 %v1554
        %v1601 = vunpack.c.l.b16 %v1555
        %v1602 = vunpack.c.h.b16 %v1555
        %v1603 = vunpack.c.l.b16 %v1556
        %v1604 = vunpack.c.h.b16 %v1556
        %v1605 = vpack.c.b16 %v1573, %v1573
        %v1606 = vpack.c.b16 %v1574, %v1574
        %v1607 = vpack.c.b16 %v1575, %v1575
        %v1608 = vpack.c.b16 %v1576, %v1576
        %v1609 = vpack.c.b16 %v1577, %v1577
        %v1610 = vpack.c.b16 %v1578, %v1578
        %v1611 = vpack.c.b16 %v1579, %v1579
        %v1612 = vpack.c.b16 %v1580, %v1580
        %v1613 = vpack.c.b16 %v1581, %v1581
        %v1614 = vpack.c.b16 %v1582, %v1582
        %v1615 = vpack.c.b16 %v1583, %v1583
        %v1616 = vpack.c.b16 %v1584, %v1584
        %v1617 = vpack.c.b16 %v1585, %v1585
        %v1618 = vpack.c.b16 %v1586, %v1586
        %v1619 = vpack.c.b16 %v1587, %v1587
        %v1620 = vpack.c.b16 %v1588, %v1588
        %v1621 = vpack.c.b16 %v1589, %v1589
        %v1622 = vpack.c.b16 %v1590, %v1590
        %v1623 = vpack.c.b16 %v1591, %v1591
        %v1624 = vpack.c.b16 %v1592, %v1592
        %v1625 = vpack.c.b16 %v1593, %v1593
        %v1626 = vpack.c.b16 %v1594, %v1594
        %v1627 = vpack.c.b16 %v1595, %v1595
        %v1628 = vpack.c.b16 %v1596, %v1596
        %v1629 = vpack.c.b16 %v1597, %v1597
        %v1630 = vpack.c.b16 %v1598, %v1598
        %v1631 = vpack.c.b16 %v1599, %v1599
        %v1632 = vpack.c.b16 %v1600, %v1600
        %v1633 = vpack.c.b16 %v1601, %v1601
        %v1634 = vpack.c.b16 %v1602, %v1602
        %v1635 = vpack.c.b16 %v1603, %v1603
        %v1636 = vpack.c.b16 %v1604, %v1604
        %1669 = vst [vmem:[%s177] sm:$0xf] %v1605
        %1670 = vst [vmem:[%s177 + $0x4] sm:$0xf] %v1606
        %1671 = vst [vmem:[%s177 + $0x8] sm:$0xf] %v1607
        %1672 = vst [vmem:[%s177 + $0xc] sm:$0xf] %v1608
        %1673 = vst [vmem:[%s177 + $0x10] sm:$0xf] %v1609
        %1674 = vst [vmem:[%s177 + $0x14] sm:$0xf] %v1610
        %1675 = vst [vmem:[%s177 + $0x18] sm:$0xf] %v1611
        %1676 = vst [vmem:[%s177 + $0x1c] sm:$0xf] %v1612
        %1677 = vst [vmem:[%s177 + $0x20] sm:$0xf] %v1613
        %1678 = vst [vmem:[%s177 + $0x24] sm:$0xf] %v1614
        %1679 = vst [vmem:[%s177 + $0x28] sm:$0xf] %v1615
        %1680 = vst [vmem:[%s177 + $0x2c] sm:$0xf] %v1616
        %1681 = vst [vmem:[%s177 + $0x30] sm:$0xf] %v1617
        %1682 = vst [vmem:[%s177 + $0x34] sm:$0xf] %v1618
        %1683 = vst [vmem:[%s177 + $0x38] sm:$0xf] %v1619
        %1684 = vst [vmem:[%s177 + $0x3c] sm:$0xf] %v1620
        %1685 = vst [vmem:[%s177 + $0x40] sm:$0xf] %v1621
        %1686 = vst [vmem:[%s177 + $0x44] sm:$0xf] %v1622
        %1687 = vst [vmem:[%s177 + $0x48] sm:$0xf] %v1623
        %1688 = vst [vmem:[%s177 + $0x4c] sm:$0xf] %v1624
        %1689 = vst [vmem:[%s177 + $0x50] sm:$0xf] %v1625
        %1690 = vst [vmem:[%s177 + $0x54] sm:$0xf] %v1626
        %1691 = vst [vmem:[%s177 + $0x58] sm:$0xf] %v1627
        %1692 = vst [vmem:[%s177 + $0x5c] sm:$0xf] %v1628
        %1693 = vst [vmem:[%s177 + $0x60] sm:$0xf] %v1629
        %1694 = vst [vmem:[%s177 + $0x64] sm:$0xf] %v1630
        %1695 = vst [vmem:[%s177 + $0x68] sm:$0xf] %v1631
        %1696 = vst [vmem:[%s177 + $0x6c] sm:$0xf] %v1632
        %1697 = vst [vmem:[%s177 + $0x70] sm:$0xf] %v1633
        %1698 = vst [vmem:[%s177 + $0x74] sm:$0xf] %v1634
        %1699 = vst [vmem:[%s177 + $0x78] sm:$0xf] %v1635
        %1700 = vst [vmem:[%s177 + $0x7c] sm:$0xf] %v1636
        %s1701 = sand.u32 %s107, 1
        %s1702 = scalar_lea.sflag [#allocation3], %s1701
        %s1703 = sand.u32 %s107, 1
        %s1704 = smul.addr %s1703, 128
        %s1705 = scalar_lea.vmem [#allocation2], %s1704
        // Predicated region
        $region33: #{tpu_custom_call.1} parent=31 // pred_check
          %p1706 = pneg %p117
        $region34: #{tpu_custom_call.1} parent=31 // pred_check_branch
          %1708 = sbr.rel (%p1706) target = $region36
        $region35: #{tpu_custom_call.1} parent=31 // pred_region
          %s1709 = smul.u32 32, %s22
          %s1711 = ssub.s32 2048, 2048
          %1712 = vsyncadd %s1702, %s1711
          %s1713 = smul.addr %s21, 32
          %s1714 = sadd.s32 %s1709, %s1713
          %s1715 = smul.addr %s1714, 64
          %s1716 = scalar_lea.hbm %s3, %s1715
          %s1717 = sshll.u32 %s1705, 4
          %s1718 = int_to_ptr.vmem [resolvable:$true] %s1717
          %1723 = dma.vmem_to_hbm [thread:$0]  %s1718, 2048, %s1716, %s1702, 64, 64, 4
        $region36: #{tpu_custom_call.1} parent=31 // pred_fallthru
          _
      $region32: #{tpu_custom_call.1} parent=5 // pred_fallthru
        _
      %p1724 = scmp.le.s32.totalorder 2, %s12
      // Predicated region
      $region37: #{tpu_custom_call.1} parent=5 // pred_check
        %p1725 = pneg %p1724
      $region38: #{tpu_custom_call.1} parent=5 // pred_check_branch
        %1727 = sbr.rel (%p1725) target = $region40
      $region39: #{tpu_custom_call.1} parent=5 // pred_region
        %s1728 = ssub.s32 %s12, 2
        // Predicated region
        $region41: #{tpu_custom_call.1} parent=39 // pred_check
          %p1729 = pneg %p123
        $region42: #{tpu_custom_call.1} parent=39 // pred_check_branch
          %1731 = sbr.rel (%p1729) target = $region44
        $region43: #{tpu_custom_call.1} parent=39 // pred_region
          %s1732 = sand.u32 %s108, 1
          %s1733 = scalar_lea.sflag [#allocation3], %s1732
          %s1734 = sand.u32 %s108, 1
          %s1735 = smul.addr %s1734, 128
          %s1736 = scalar_lea.vmem [#allocation2], %s1735
          %1737 = dma.done %s1733, 2048
        $region44: #{tpu_custom_call.1} parent=39 // pred_fallthru
          _
      $region40: #{tpu_custom_call.1} parent=5 // pred_fallthru
        _
    $region6: #{tpu_custom_call.1} parent=1 // loop_footer
      %s16 = sadd.s32 1, %s12
    $region7: #{tpu_custom_call.1} parent=1 // loop_footer_branch
      %11 = sbr.rel target = $region3
    $region8: #{tpu_custom_call.1} parent=1 // loop_exit
      _
    %1738 = vsyncpa [#allocation3], 1
    %s1739 = scalar_lea.sflag [#allocation3], 1
    %1740 = vsyncpa %s1739, 1

</llo_original>
